<compile_context>
chip_gen: v7x
topology: tpu7x:2x2x1
jax: 0.10.0
libtpu: 0.0.40
codegen_flags: <defaults>
</compile_context>

<pallas_src>
import jax
import jax.numpy as jnp
from jax.experimental import pallas as pl
from jax.experimental.pallas import tpu as pltpu


def _round_up(x, m):
    return (x + m - 1) // m * m


def _vmem_caps():
    """(tile_budget_bytes, vmem_limit_bytes), derived from the device when possible."""
    cap = 64 * 1024 * 1024                      # fallback: v7x per-TensorCore VMEM
    try:
        cap = int(pltpu.get_tpu_info().vmem_capacity_bytes)
    except Exception:
        pass
    cap = min(cap, 64 * 1024 * 1024)            # never assume more than v7x per-TC VMEM
    return int(cap * 0.45), int(cap * 0.75)


def _choose_block_m(B, in_dim, hid_pad, wbytes, use_bf16, budget):
    """Pick the batch tile: biggest tile that fits VMEM, minimal padding waste,
    even step count when the batch is large (v7x dual-TC balance)."""
    in_lanes = _round_up(in_dim, 128)           # VMEM lane padding of the x tile

    def est(bm):
        resident = 2 * (in_dim * hid_pad * wbytes       # W1 (double-buffered alloc)
                        + 8 * hid_pad * 4               # b1 (sublane-padded)
                        + hid_pad * 128 * wbytes)       # W2 column (lane-padded)
        xtile = 2 * bm * in_lanes * 4                   # streamed f32 x, double-buffered
        inter = bm * hid_pad * 4                        # h (f32)
        if use_bf16:
            inter += bm * (hid_pad + in_lanes) * wbytes  # bf16 copies of h and x
        inter += bm * 128 * 4                           # (bm, 1) z column (lane-padded)
        out = 2 * 8 * bm * 4                            # (1, bm) out, sublane-padded
        return int(1.3 * (resident + xtile + inter + out))

    bm_fit = 128
    while bm_fit < 2048 and est(bm_fit + 128) <= budget:
        bm_fit += 128

    if B <= 1024 and _round_up(B, 128) <= bm_fit:
        return B                                         # single exact step, zero padding
    n_steps = max(2, pl.cdiv(B, bm_fit))
    if n_steps % 2:
        n_steps += 1                                     # even steps: balanced dual-TC split
    return min(bm_fit, _round_up(pl.cdiv(B, n_steps), 128))


def _discriminator_kernel(x_ref, w1_ref, b1_ref, w2_ref, b2_ref, o_ref):
    cdt = w1_ref.dtype
    # First layer on the MXU, f32 accumulation.  x arrives as f32 from HBM; the
    # (optional) bf16 cast is done in-register here, not in a wrapper pass.
    h = jnp.dot(x_ref[...].astype(cdt), w1_ref[...],
                preferred_element_type=jnp.float32)          # (bm, hid_pad) f32
    h = jnp.maximum(h + b1_ref[...], 0.0)                    # bias + ReLU (VPU)

    # Second layer without transposing the large h operand: (bm, hid_pad) @ (hid_pad, 1).
    z = jnp.dot(h.astype(cdt), w2_ref[...],
                preferred_element_type=jnp.float32)          # (bm, 1) f32
    # Tiny relayout of the (bm, 1) column to the lane-dense (1, bm) output row.
    z = jnp.transpose(z) + b2_ref[0]                         # scalar bias from SMEM

    # Numerically stable sigmoid: exp argument is always <= 0; reciprocal on the EUP.
    pos = z >= 0.0
    ez = jnp.exp(jnp.where(pos, -z, z))
    inv = pl.reciprocal(1.0 + ez, approx=True)
    o_ref[...] = jnp.where(pos, inv, ez * inv).astype(o_ref.dtype)


def prepare_discriminator_params(w1, b1, w2, b2, *, use_bf16=False):
    """One-time weight prep (pad hidden dim to a lane multiple, optional bf16 cast).

    Zero padding is exact: padded hidden units have zero weights in both layers and
    ReLU(0) = 0.  Call once; do NOT put this on the per-forward path.
    use_bf16=False (default) keeps f32 compute and matches PyTorch semantics.
    """
    in_dim, hid_dim = w1.shape
    hid_pad = _round_up(hid_dim, 128)
    wdt = jnp.bfloat16 if use_bf16 else jnp.float32
    w1p = jnp.pad(w1.astype(jnp.float32),
                  ((0, 0), (0, hid_pad - hid_dim))).astype(wdt)
    b1p = jnp.pad(b1.astype(jnp.float32).reshape(1, hid_dim),
                  ((0, 0), (0, hid_pad - hid_dim)))
    w2p = jnp.pad(w2.astype(jnp.float32).reshape(hid_dim, 1),
                  ((0, hid_pad - hid_dim), (0, 0))).astype(wdt)
    b2s = jnp.asarray(b2, jnp.float32).reshape(1)
    return w1p, b1p, w2p, b2s


def discriminator_forward(x, params, *, block_m=None):
    """sigmoid(relu(x @ w1 + b1) @ w2 + b2) -> (B, 1) float32."""
    w1p, b1p, w2p, b2s = params
    B, in_dim = x.shape
    hid_pad = w1p.shape[1]
    use_bf16 = w1p.dtype == jnp.bfloat16
    wbytes = 2 if use_bf16 else 4

    budget, vmem_limit = _vmem_caps()
    if block_m is None:
        block_m = _choose_block_m(B, in_dim, hid_pad, wbytes, use_bf16, budget)
    else:
        block_m = _round_up(block_m, 128)
    grid = (pl.cdiv(B, block_m),)

    out = pl.pallas_call(
        _discriminator_kernel,
        out_shape=jax.ShapeDtypeStruct((1, B), jnp.float32),
        grid_spec=pltpu.PrefetchScalarGridSpec(
            num_scalar_prefetch=0,
            grid=grid,
            in_specs=[
                # x streamed over the batch, feature dim left at its natural size
                # (block dim == full array dim is exempt from the 128-lane rule):
                # x is read once from HBM as f32, no pad / pre-cast pass.
                pl.BlockSpec((block_m, in_dim), lambda i: (i, 0)),
                pl.BlockSpec((in_dim, hid_pad), lambda i: (0, 0)),   # W1: resident
                pl.BlockSpec((1, hid_pad), lambda i: (0, 0)),        # b1: resident
                pl.BlockSpec((hid_pad, 1), lambda i: (0, 0)),        # W2 col: resident
                pl.BlockSpec(memory_space=pltpu.MemorySpace.SMEM),   # b2: scalar
            ],
            # Lane-dense output row; a ragged last tile is handled by Pallas'
            # clamped edge DMAs (OOB reads feed only masked-out output lanes).
            out_specs=pl.BlockSpec((1, block_m), lambda i: (0, i)),
        ),
        compiler_params=pltpu.CompilerParams(
            dimension_semantics=("parallel",),
            vmem_limit_bytes=vmem_limit),
    )(x, w1p, b1p, w2p, b2s)

    # (1, B) -> (B, 1): row-major reshape, pure metadata (no transpose / copy).
    return out.reshape(B, 1)


def discriminator_apply(x, w1, b1, w2, b2, *, use_bf16=False, block_m=None):
    """Convenience path. Prefer prepare_discriminator_params() once + jitted
    discriminator_forward so weight prep stays off the per-call path."""
    return discriminator_forward(
        x, prepare_discriminator_params(w1, b1, w2, b2, use_bf16=use_bf16),
        block_m=block_m)


def _reference(x, w1, b1, w2, b2):
    # Float32 reference matching the PyTorch module's semantics.
    h = jnp.maximum(jnp.dot(x, w1) + b1.reshape(1, -1), 0.0)
    z = jnp.dot(h, w2) + b2.reshape(1, 1)
    return jax.nn.sigmoid(z)


if __name__ == "__main__":
    key = jax.random.PRNGKey(0)

    def make_case(k, B, in_dim, hid_dim):
        kx, kw1, kb1, kw2, kb2 = jax.random.split(k, 5)
        bound1 = 1.0 / (in_dim ** 0.5)
        bound2 = 1.0 / (hid_dim ** 0.5)
        x = jax.random.normal(kx, (B, in_dim), jnp.float32)
        w1 = jax.random.uniform(kw1, (in_dim, hid_dim), jnp.float32, -bound1, bound1)
        b1 = jax.random.uniform(kb1, (hid_dim,), jnp.float32, -bound1, bound1)
        w2 = jax.random.uniform(kw2, (hid_dim, 1), jnp.float32, -bound2, bound2)
        b2 = jax.random.uniform(kb2, (1,), jnp.float32, -bound2, bound2)
        return x, w1, b1, w2, b2

    fwd = jax.jit(discriminator_forward, static_argnames=("block_m",))
    k1, k2, k3 = jax.random.split(key, 3)

    # Case 1: module-sized shapes (batch=8, in_dim=32, hid_dim=32), f32 path.
    x, w1, b1, w2, b2 = make_case(k1, 8, 32, 32)
    params = prepare_discriminator_params(w1, b1, w2, b2)        # one-time weight prep
    out = jax.block_until_ready(fwd(x, params))
    ref = _reference(x, w1, b1, w2, b2)
    assert out.shape == (8, 1), out.shape
    assert jnp.allclose(out, ref, atol=1e-3, rtol=1e-3), "mismatch (small f32)"

    # Case 2: ragged, non-aligned dims (B=300, in=20, hid=33): single exact full-batch
    # block, unpadded/uncast x, zero wrapper-side padding anywhere.
    x, w1, b1, w2, b2 = make_case(k2, 300, 20, 33)
    params = prepare_discriminator_params(w1, b1, w2, b2)
    out = jax.block_until_ready(fwd(x, params))
    ref = _reference(x, w1, b1, w2, b2)
    assert out.shape == (300, 1), out.shape
    assert jnp.allclose(out, ref, atol=1e-3, rtol=1e-3), "mismatch (ragged f32)"

    # Case 3: multi-step grid + gated bf16 MXU path (B=2400 -> two 1280-row steps,
    # ragged last tile handled by clamped edge DMAs).  Reference stays f32.
    x, w1, b1, w2, b2 = make_case(k3, 2400, 64, 96)
    params = prepare_discriminator_params(w1, b1, w2, b2, use_bf16=True)
    out = jax.block_until_ready(fwd(x, params))
    ref = _reference(x, w1, b1, w2, b2)
    assert out.shape == (2400, 1), out.shape
    assert jnp.allclose(out, ref, atol=1e-2, rtol=1e-2), "mismatch (tiled bf16)"

    print("KERNEL_OK")
</pallas_src>

<mosaic_0001>
module attributes {stable_mosaic.version = 11 : i64} {
  func.func @_discriminator_kernel(%arg0: i32, %arg1: memref<8x32xf32, #tpu.memory_space<vmem>>, %arg2: memref<32x128xf32, #tpu.memory_space<vmem>>, %arg3: memref<1x128xf32, #tpu.memory_space<vmem>>, %arg4: memref<128x1xf32, #tpu.memory_space<vmem>>, %arg5: memref<1xf32, #tpu.memory_space<smem>>, %arg6: memref<1x8xf32, #tpu.memory_space<vmem>>) attributes {dimension_semantics = [#tpu.dimension_semantics<parallel>], iteration_bounds = array<i64: 1>, scalar_prefetch = 0 : i64, scratch_operands = 0 : i64, tpu.core_type = #tpu.core_type<tc>, window_params = [{transform_indices = @transform_0, window_bounds = array<i64: 8, 32>}, {pipeline_mode = #tpu.pipeline_mode<synchronous>, transform_indices = @transform_1, window_bounds = array<i64: 32, 128>}, {pipeline_mode = #tpu.pipeline_mode<synchronous>, transform_indices = @transform_2, window_bounds = array<i64: 1, 128>}, {pipeline_mode = #tpu.pipeline_mode<synchronous>, transform_indices = @transform_3, window_bounds = array<i64: 128, 1>}, {transform_indices = @transform_4, window_bounds = array<i64: 1>}, {transform_indices = @transform_5, window_bounds = array<i64: 1, 8>}]} {
    %c0 = arith.constant 0 : index
    %c0_0 = arith.constant 0 : index
    %0 = vector.load %arg1[%c0, %c0_0] : memref<8x32xf32, #tpu.memory_space<vmem>>, vector<8x32xf32>
    %c0_1 = arith.constant 0 : index
    %c0_2 = arith.constant 0 : index
    %1 = vector.load %arg2[%c0_1, %c0_2] : memref<32x128xf32, #tpu.memory_space<vmem>>, vector<32x128xf32>
    %cst = arith.constant dense<0.000000e+00> : vector<8x128xf32>
    %2 = tpu.matmul %0, %1, %cst {dimension_numbers = #tpu.dot_dimension_numbers<[1], [0], [0], [1], [0, 0, 1, 1], [], []>} : vector<8x32xf32>, vector<32x128xf32>, vector<8x128xf32> -> vector<8x128xf32>
    %c0_3 = arith.constant 0 : index
    %c0_4 = arith.constant 0 : index
    %3 = vector.load %arg3[%c0_3, %c0_4] : memref<1x128xf32, #tpu.memory_space<vmem>>, vector<1x128xf32>
    %4 = vector.broadcast %3 : vector<1x128xf32> to vector<8x128xf32>
    %5 = arith.addf %2, %4 : vector<8x128xf32>
    %cst_5 = arith.constant 0.000000e+00 : f32
    %6 = vector.broadcast %cst_5 : f32 to vector<8x128xf32>
    %7 = arith.maximumf %5, %6 : vector<8x128xf32>
    %c0_6 = arith.constant 0 : index
    %c0_7 = arith.constant 0 : index
    %8 = vector.load %arg4[%c0_6, %c0_7] : memref<128x1xf32, #tpu.memory_space<vmem>>, vector<128x1xf32>
    %cst_8 = arith.constant dense<0.000000e+00> : vector<8x1xf32>
    %9 = tpu.matmul %7, %8, %cst_8 {dimension_numbers = #tpu.dot_dimension_numbers<[1], [0], [0], [1], [0, 0, 1, 1], [], []>} : vector<8x128xf32>, vector<128x1xf32>, vector<8x1xf32> -> vector<8x1xf32>
    %10 = tpu.transpose %9, [1, 0] : vector<8x1xf32> -> vector<1x8xf32>
    %c0_9 = arith.constant 0 : index
    %11 = memref.load %arg5[%c0_9] : memref<1xf32, #tpu.memory_space<smem>>
    %12 = vector.broadcast %11 : f32 to vector<1x8xf32>
    %13 = arith.addf %10, %12 : vector<1x8xf32>
    %cst_10 = arith.constant 0.000000e+00 : f32
    %14 = vector.broadcast %cst_10 : f32 to vector<1x8xf32>
    %15 = arith.cmpf oge, %13, %14 : vector<1x8xf32>
    %cst_11 = arith.constant 0.000000e+00 : f32
    %16 = vector.broadcast %cst_11 : f32 to vector<1x8xf32>
    %17 = arith.subf %16, %13 : vector<1x8xf32>
    %18 = arith.select %15, %17, %13 : vector<1x8xi1>, vector<1x8xf32>
    %19 = math.exp %18 : vector<1x8xf32>
    %cst_12 = arith.constant 1.000000e+00 : f32
    %20 = vector.broadcast %cst_12 : f32 to vector<1x8xf32>
    %21 = arith.addf %20, %19 : vector<1x8xf32>
    %22 = tpu.reciprocal %21 {approx = true} : vector<1x8xf32> -> vector<1x8xf32>
    %23 = arith.mulf %19, %22 : vector<1x8xf32>
    %24 = arith.select %15, %22, %23 : vector<1x8xi1>, vector<1x8xf32>
    %c0_13 = arith.constant 0 : index
    %c0_14 = arith.constant 0 : index
    %25 = vector.load %arg6[%c0_13, %c0_14] : memref<1x8xf32, #tpu.memory_space<vmem>>, vector<1x8xf32>
    tpu.vector_store %arg6[%c0_13, %c0_14], %24 {strides = array<i32>} : memref<1x8xf32, #tpu.memory_space<vmem>>, vector<1x8xf32>,
    return
  }
  func.func @transform_0(%arg0: i32) -> (i32, i32) {
    %c0_i32 = arith.constant 0 : i32
    %c0_i32_0 = arith.constant 0 : i32
    return %arg0, %c0_i32 : i32, i32
  }
  func.func @transform_1(%arg0: i32) -> (i32, i32) {
    %c0_i32 = arith.constant 0 : i32
    %c0_i32_0 = arith.constant 0 : i32
    %c0_i32_1 = arith.constant 0 : i32
    return %c0_i32, %c0_i32_0 : i32, i32
  }
  func.func @transform_2(%arg0: i32) -> (i32, i32) {
    %c0_i32 = arith.constant 0 : i32
    %c0_i32_0 = arith.constant 0 : i32
    %c0_i32_1 = arith.constant 0 : i32
    return %c0_i32, %c0_i32_0 : i32, i32
  }
  func.func @transform_3(%arg0: i32) -> (i32, i32) {
    %c0_i32 = arith.constant 0 : i32
    %c0_i32_0 = arith.constant 0 : i32
    %c0_i32_1 = arith.constant 0 : i32
    return %c0_i32, %c0_i32_0 : i32, i32
  }
  func.func @transform_4(%arg0: i32) -> i32 {
    %c0_i32 = arith.constant 0 : i32
    %c0_i32_0 = arith.constant 0 : i32
    return %c0_i32 : i32
  }
  func.func @transform_5(%arg0: i32) -> (i32, i32) {
    %c0_i32 = arith.constant 0 : i32
    %c0_i32_0 = arith.constant 0 : i32
    return %c0_i32, %arg0 : i32, i32
  }
}

</mosaic_0001>

<llo_original>
// kernel: discriminator_forward.1
$region0: #{discriminator_forward.1}
  #allocation0 [shape = 'u32[]', space=smem, size = 0x4, offset = 0x4, fixed_abs, tag = 'smem constant byte address 0x4 - core index']
  #allocation1 [shape = 'u32[144,128]{1,0:T(1,128)}', space=vmem, size = 0x12000, scoped, tag = 'internal scratch']
  #allocation2 [shape = 'f32[1]{0:T(128)S(6)}', space=smem, size = 0x200, scoped, tag = 'scoped memory for discriminator_forward.1']
  %s0 = inlined_call_operand.vmem [shape: f32[8,32], index: 0, kind: input, shape index: {}]
  %s1 = inlined_call_operand.vmem [shape: f32[32,128], index: 1, kind: input, shape index: {}]
  %s2 = inlined_call_operand.vmem [shape: f32[1,128], index: 2, kind: input, shape index: {}]
  %s3 = inlined_call_operand.vmem [shape: f32[128,1], index: 3, kind: input, shape index: {}]
  %s4 = inlined_call_operand.<no memory space> [shape: f32[1], index: 4, kind: input, shape index: {}]
  %s5 = inlined_call_operand.hbm [shape: f32[1,8], index: 5, kind: output, shape index: {}]
  %s6 = sld [smem:[#allocation0]]
  $region30: #{discriminator_forward.1} parent=0
    _
  %s8 = ssub.s32 1, %s6
  %s9 = scalar_select 0, %s8, %s6
  %10 = sst [smem:[#allocation2]] %s4
  $region1: #{discriminator_forward.1} parent=0
    #allocation3 [shape = 'u8[512]{0}', space=vmem, size = 0x400, scoped, tag = 'output window, operand 0, single buffered']
    #allocation4 [shape = 's32[1]{0}', space=sflag, size = 0x4, scoped, tag = 'scoped memory for discriminator_forward.1']
    %11 = vsyncpa [#allocation4], 0
    // Predicated region
    $region2: #{discriminator_forward.1} parent=1 // pred_check
      _
    $region3: #{discriminator_forward.1} parent=1 // pred_check_branch
      %13 = sbr.rel (0) target = $region5
    $region4: #{discriminator_forward.1} parent=1 // pred_region
      _
    $region5: #{discriminator_forward.1} parent=1 // pred_fallthru
      _
    // Predicated region
    $region6: #{discriminator_forward.1} parent=1 // pred_check
      _
    $region7: #{discriminator_forward.1} parent=1 // pred_check_branch
      %15 = sbr.rel (0) target = $region9
    $region8: #{discriminator_forward.1} parent=1 // pred_region
      _
    $region9: #{discriminator_forward.1} parent=1 // pred_fallthru
      _
    // Predicated region
    $region10: #{discriminator_forward.1} parent=1 // pred_check
      _
    $region11: #{discriminator_forward.1} parent=1 // pred_check_branch
      %17 = sbr.rel (0) target = $region13
    $region12: #{discriminator_forward.1} parent=1 // pred_region
      _
    $region13: #{discriminator_forward.1} parent=1 // pred_fallthru
      _
    // Predicated region
    $region14: #{discriminator_forward.1} parent=1 // pred_check
      _
    $region15: #{discriminator_forward.1} parent=1 // pred_check_branch
      %19 = sbr.rel (0) target = $region17
    $region16: #{discriminator_forward.1} parent=1 // pred_region
      _
    $region17: #{discriminator_forward.1} parent=1 // pred_fallthru
      _
    // Predicated region
    $region18: #{discriminator_forward.1} parent=1 // pred_check
      _
    $region19: #{discriminator_forward.1} parent=1 // pred_check_branch
      %21 = sbr.rel (0) target = $region21
    $region20: #{discriminator_forward.1} parent=1 // pred_region
      _
    $region21: #{discriminator_forward.1} parent=1 // pred_fallthru
      _
    %v22 = vld [vmem:[%s0] sm:$0xff]
    %v23 = vld [vmem:[%s1] sm:$0xff]
    %v24 = vld [vmem:[%s1 + $0x8] sm:$0xff]
    %v25 = vld [vmem:[%s1 + $0x10] sm:$0xff]
    %v26 = vld [vmem:[%s1 + $0x18] sm:$0xff]
    %v27 = vld [vmem:[%s2] sm:$0x1]
    %v29 = vlaneseq
    %v30 = vshrl.u32 %v29, 7
    %v31 = vsub.s32 0, %v30
    %v32 = vrot.slane %v27, %v31
    %vm34 = vcmask 261120
    %v36 = vsel %vm34, %v22, 0
    %38 = vmatprep.subr.mxu0 0.0
    %39 = vmatpush1.msra.mxu0 %v23
    %40 = vmatprep.subr.mxu0 0.0
    %41 = vmatpush1.msra.mxu0 %v24
    %42 = vmatprep.subr.mxu0 0.0
    %43 = vmatpush1.msra.mxu0 %v25
    %44 = vmatprep.subr.mxu0 0.0
    %45 = vmatpush1.msra.mxu0 %v26
    %46 = vmatprep.subr.mxu0 0.0
    %47 = vmatpush1.msra.mxu0 0.0
    %48 = vmatprep.subr.mxu0 0.0
    %49 = vmatpush1.msra.mxu0 0.0
    %50 = vmatprep.subr.mxu0 0.0
    %51 = vmatpush1.msra.mxu0 0.0
    %52 = vmatprep.subr.mxu0 0.0
    %53 = vmatpush1.msra.mxu0 0.0
    %54 = vmatprep.subr.mxu0 0.0
    %55 = vmatpush1.msra.mxu0 0.0
    %56 = vmatprep.subr.mxu0 0.0
    %57 = vmatpush1.msra.mxu0 0.0
    %58 = vmatprep.subr.mxu0 0.0
    %59 = vmatpush1.msra.mxu0 0.0
    %60 = vmatprep.subr.mxu0 0.0
    %61 = vmatpush1.msra.mxu0 0.0
    %62 = vmatprep.subr.mxu0 0.0
    %63 = vmatpush1.msra.mxu0 0.0
    %64 = vmatprep.subr.mxu0 0.0
    %65 = vmatpush1.msra.mxu0 0.0
    %66 = vmatprep.subr.mxu0 0.0
    %67 = vmatpush1.msra.mxu0 0.0
    %68 = vmatprep.subr.mxu0 0.0
    %69 = vmatpush1.msra.mxu0 0.0
    %70 = vmatprep.subr.mxu0 0.0
    %71 = vmatpush1.msra.mxu0 0.0
    %72 = vmatprep.subr.mxu0 0.0
    %73 = vmatpush1.msra.mxu0 0.0
    %74 = vmatprep.subr.mxu0 0.0
    %75 = vmatpush1.msra.mxu0 0.0
    %76 = vmatprep.subr.mxu0 0.0
    %77 = vmatpush1.msra.mxu0 0.0
    %78 = vmatprep.subr.mxu0 0.0
    %79 = vmatpush1.msra.mxu0 0.0
    %80 = vmatprep.subr.mxu0 0.0
    %81 = vmatpush1.msra.mxu0 0.0
    %82 = vmatprep.subr.mxu0 0.0
    %83 = vmatpush1.msra.mxu0 0.0
    %84 = vmatprep.subr.mxu0 0.0
    %85 = vmatpush1.msra.mxu0 0.0
    %86 = vmatprep.subr.mxu0 0.0
    %87 = vmatpush1.msra.mxu0 0.0
    %88 = vmatprep.subr.mxu0 0.0
    %89 = vmatpush1.msra.mxu0 0.0
    %90 = vmatprep.subr.mxu0 0.0
    %91 = vmatpush1.msra.mxu0 0.0
    %92 = vmatprep.subr.mxu0 0.0
    %93 = vmatpush1.msra.mxu0 0.0
    %94 = vmatprep.subr.mxu0 0.0
    %95 = vmatpush1.msra.mxu0 0.0
    %96 = vmatprep.subr.mxu0 0.0
    %97 = vmatpush1.msra.mxu0 0.0
    %98 = vmatprep.subr.mxu0 0.0
    %99 = vmatpush1.msra.mxu0 0.0
    %100 = vmatprep.subr.mxu0 0.0
    %101 = vmatpush1.msra.mxu0 0.0
    %102 = vmatprep.mubr.f32.mxu0 0.0
    %103 = vmatmul.mubr.f32.gmra.mrb[0].mxu0 %v36
    %v104 = vpop.f32.mrb[0].mxu0
    %v105 = vadd.f32 %v32, %v104
    %v106 = vpop.f32.mrb[0].mxu0
    %107 = vdwg.mxu0
    %v108 = vmax.f32 %v105, 0.0
    %v109 = vld [vmem:[%s3] sm:$0xff]
    %v110 = vld [vmem:[%s3 + $0x8] sm:$0xff]
    %v111 = vld [vmem:[%s3 + $0x10] sm:$0xff]
    %v112 = vld [vmem:[%s3 + $0x18] sm:$0xff]
    %v113 = vld [vmem:[%s3 + $0x20] sm:$0xff]
    %v114 = vld [vmem:[%s3 + $0x28] sm:$0xff]
    %v115 = vld [vmem:[%s3 + $0x30] sm:$0xff]
    %v116 = vld [vmem:[%s3 + $0x38] sm:$0xff]
    %v117 = vld [vmem:[%s3 + $0x40] sm:$0xff]
    %v118 = vld [vmem:[%s3 + $0x48] sm:$0xff]
    %v119 = vld [vmem:[%s3 + $0x50] sm:$0xff]
    %v120 = vld [vmem:[%s3 + $0x58] sm:$0xff]
    %v121 = vld [vmem:[%s3 + $0x60] sm:$0xff]
    %v122 = vld [vmem:[%s3 + $0x68] sm:$0xff]
    %v123 = vld [vmem:[%s3 + $0x70] sm:$0xff]
    %v124 = vld [vmem:[%s3 + $0x78] sm:$0xff]
    %125 = vmatprep.subr.mxu0 0.0
    %126 = vmatpush1.msra.mxu0 %v109
    %127 = vmatprep.subr.mxu0 0.0
    %128 = vmatpush1.msra.mxu0 %v110
    %129 = vmatprep.subr.mxu0 0.0
    %130 = vmatpush1.msra.mxu0 %v111
    %131 = vmatprep.subr.mxu0 0.0
    %132 = vmatpush1.msra.mxu0 %v112
    %133 = vmatprep.subr.mxu0 0.0
    %134 = vmatpush1.msra.mxu0 %v113
    %135 = vmatprep.subr.mxu0 0.0
    %136 = vmatpush1.msra.mxu0 %v114
    %137 = vmatprep.subr.mxu0 0.0
    %138 = vmatpush1.msra.mxu0 %v115
    %139 = vmatprep.subr.mxu0 0.0
    %140 = vmatpush1.msra.mxu0 %v116
    %141 = vmatprep.subr.mxu0 0.0
    %142 = vmatpush1.msra.mxu0 %v117
    %143 = vmatprep.subr.mxu0 0.0
    %144 = vmatpush1.msra.mxu0 %v118
    %145 = vmatprep.subr.mxu0 0.0
    %146 = vmatpush1.msra.mxu0 %v119
    %147 = vmatprep.subr.mxu0 0.0
    %148 = vmatpush1.msra.mxu0 %v120
    %149 = vmatprep.subr.mxu0 0.0
    %150 = vmatpush1.msra.mxu0 %v121
    %151 = vmatprep.subr.mxu0 0.0
    %152 = vmatpush1.msra.mxu0 %v122
    %153 = vmatprep.subr.mxu0 0.0
    %154 = vmatpush1.msra.mxu0 %v123
    %155 = vmatprep.subr.mxu0 0.0
    %156 = vmatpush1.msra.mxu0 %v124
    %157 = vmatprep.subr.mxu0 0.0
    %158 = vmatpush1.msra.mxu0 0.0
    %159 = vmatprep.subr.mxu0 0.0
    %160 = vmatpush1.msra.mxu0 0.0
    %161 = vmatprep.subr.mxu0 0.0
    %162 = vmatpush1.msra.mxu0 0.0
    %163 = vmatprep.subr.mxu0 0.0
    %164 = vmatpush1.msra.mxu0 0.0
    %165 = vmatprep.subr.mxu0 0.0
    %166 = vmatpush1.msra.mxu0 0.0
    %167 = vmatprep.subr.mxu0 0.0
    %168 = vmatpush1.msra.mxu0 0.0
    %169 = vmatprep.subr.mxu0 0.0
    %170 = vmatpush1.msra.mxu0 0.0
    %171 = vmatprep.subr.mxu0 0.0
    %172 = vmatpush1.msra.mxu0 0.0
    %173 = vmatprep.subr.mxu0 0.0
    %174 = vmatpush1.msra.mxu0 0.0
    %175 = vmatprep.subr.mxu0 0.0
    %176 = vmatpush1.msra.mxu0 0.0
    %177 = vmatprep.subr.mxu0 0.0
    %178 = vmatpush1.msra.mxu0 0.0
    %179 = vmatprep.subr.mxu0 0.0
    %180 = vmatpush1.msra.mxu0 0.0
    %181 = vmatprep.subr.mxu0 0.0
    %182 = vmatpush1.msra.mxu0 0.0
    %183 = vmatprep.subr.mxu0 0.0
    %184 = vmatpush1.msra.mxu0 0.0
    %185 = vmatprep.subr.mxu0 0.0
    %186 = vmatpush1.msra.mxu0 0.0
    %187 = vmatprep.subr.mxu0 0.0
    %188 = vmatpush1.msra.mxu0 0.0
    %189 = vmatprep.mubr.f32.mxu0 0.0
    %190 = vmatmul.mubr.f32.gmra.mrb[0].mxu0 %v108
    %v191 = vpop.f32.mrb[0].mxu0
    %v192 = vadd.f32 0.0, %v191
    %v193 = vpop.f32.mrb[0].mxu0
    %194 = vdwg.mxu0
    %195 = vxpose.xlu0.b32.start [1/16] %v192, 128
    %196 = vxpose.xlu0.b32.cont [2/16] 0.0, 128
    %197 = vxpose.xlu0.b32.cont [3/16] 0.0, 128
    %198 = vxpose.xlu0.b32.cont [4/16] 0.0, 128
    %199 = vxpose.xlu0.b32.cont [5/16] 0.0, 128
    %200 = vxpose.xlu0.b32.cont [6/16] 0.0, 128
    %201 = vxpose.xlu0.b32.cont [7/16] 0.0, 128
    %202 = vxpose.xlu0.b32.cont [8/16] 0.0, 128
    %203 = vxpose.xlu0.b32.cont [9/16] 0.0, 128
    %204 = vxpose.xlu0.b32.cont [10/16] 0.0, 128
    %205 = vxpose.xlu0.b32.cont [11/16] 0.0, 128
    %206 = vxpose.xlu0.b32.cont [12/16] 0.0, 128
    %207 = vxpose.xlu0.b32.cont [13/16] 0.0, 128
    %208 = vxpose.xlu0.b32.cont [14/16] 0.0, 128
    %209 = vxpose.xlu0.b32.cont [15/16] 0.0, 128
    %210 = vxpose.xlu0.b32.end [16/16] 0.0, 128
    %v211 = vpop.trf.xlu0
    %v212 = vpop.trf.xlu0
    %v213 = vpop.trf.xlu0
    %v214 = vpop.trf.xlu0
    %v215 = vpop.trf.xlu0
    %v216 = vpop.trf.xlu0
    %v217 = vpop.trf.xlu0
    %v218 = vpop.trf.xlu0
    %v219 = vpop.trf.xlu0
    %v220 = vpop.trf.xlu0
    %v221 = vpop.trf.xlu0
    %v222 = vpop.trf.xlu0
    %v223 = vpop.trf.xlu0
    %v224 = vpop.trf.xlu0
    %v225 = vpop.trf.xlu0
    %v226 = vpop.trf.xlu0
    %s227 = sld [smem:[#allocation2]]
    %v228 = vstv %s227
    %v229 = vadd.f32 %v211, %v228
    %vm230 = vcmp.ge.f32.partialorder %v229, 0.0
    %v231 = vsub.f32 0.0, %v229
    %v232 = vsel %vm230, %v231, %v229
    %v233 = vmul.f32 %v232, 1.442695
    %v234 = vpow.pop %v233
    %v235 = vadd.f32 %v234, 1.0
    %v236 = vrcp.pop %v235
    %v237 = vmul.f32 %v234, %v236
    %v238 = vsel %vm230, %v236, %v237
    %vm239 = vcmask 57344
    %240 = vst.msk [vmem:[#allocation3] sm:$0x1] %vm239, %v238
    // Predicated region
    $region22: #{discriminator_forward.1} parent=1 // pred_check
      _
    $region23: #{discriminator_forward.1} parent=1 // pred_check_branch
      %242 = sbr.rel (0) target = $region25
    $region24: #{discriminator_forward.1} parent=1 // pred_region
      %s244 = ssub.s32 16, 16
      %245 = vsyncadd [#allocation4], %s244
      %s247 = sshll.u32 [#allocation3], 4
      %s248 = int_to_ptr.vmem [resolvable:$true] %s247
      %250 = dma.vmem_to_hbm [thread:$0]  %s248, 16, %s5, [#allocation4]
    $region25: #{discriminator_forward.1} parent=1 // pred_fallthru
      _
    // Predicated region
    $region26: #{discriminator_forward.1} parent=1 // pred_check
      _
    $region27: #{discriminator_forward.1} parent=1 // pred_check_branch
      %252 = sbr.rel (0) target = $region29
    $region28: #{discriminator_forward.1} parent=1 // pred_region
      %253 = dma.done [#allocation4], 16
    $region29: #{discriminator_forward.1} parent=1 // pred_fallthru
      _
    %254 = vsyncpa [#allocation4], 1

</llo_original>
